<compile_context>
chip_gen: v6e
topology: v6e:2x2x1
jax: 0.10.0
libtpu: 0.0.40
codegen_flags: <defaults>
</compile_context>

<pallas_src>
import functools

import jax
import jax.numpy as jnp
from jax.experimental import pallas as pl
from jax.experimental.pallas import tpu as pltpu


def _squash_kernel(x_ref, o_ref, *, n_feat, hw):
    """Squash over the feature index of a (rows, n_feat*hw) lane-dense slab.

    Lane index j = f*hw + p (f: feature index, p: spatial position). All lanes
    of a row with the same p form one capsule vector of length n_feat.
    """
    x = x_ref[...].astype(jnp.float32)            # (row_tile, n_feat*hw), f32
    xsq = x * x

    # Cyclic group-sum over the feature index via static lane rotations (XLU):
    # summing xsq rotated by {0, hw, 2*hw, ...} (mod n_feat*hw) puts
    # ||capsule||^2 into every lane, already broadcast across its group.
    # (All rolls here have a lane extent that is a multiple of 128; exact f32.)
    if (n_feat & (n_feat - 1)) == 0:              # power of two: log2(n_feat) rolls
        sq = xsq
        shift = hw
        while shift < n_feat * hw:
            sq = sq + pltpu.roll(sq, shift=shift, axis=1)
            shift *= 2
    else:                                         # generic: n_feat - 1 rolls
        sq = xsq
        for f in range(1, n_feat):
            sq = sq + pltpu.roll(xsq, shift=f * hw, axis=1)

    norm = jnp.sqrt(sq)
    # squash scale = ||v|| / (1 + ||v||^2); reciprocal goes to the EUP slot.
    scale = norm * pl.reciprocal(1.0 + sq, approx=True)
    o_ref[...] = (x * scale).astype(o_ref.dtype)


def _choose_row_tile(n_rows, lanes, itemsize):
    """Pick a large, VMEM-budgeted row tile (amortizes per-step pipeline cost)."""
    target_block_bytes = 2 * 1024 * 1024          # ~2 MiB/block; x2 buffers x (in+out)
    tile = max(8, (target_block_bytes // max(lanes * itemsize, 1)) // 8 * 8)
    if n_rows <= tile:
        return n_rows                             # one block covers everything
    # Keep >= ~4 grid steps so both v7x TensorCores get work under "parallel".
    steps = (n_rows + tile - 1) // tile
    if steps < 4:
        tile = max(8, (((n_rows + 3) // 4) + 7) // 8 * 8)
    return tile


def _squash_pallas(x2d, n_feat, hw, row_tile=None):
    """x2d: (rows, n_feat*hw). Squash every length-n_feat capsule (lane stride hw)."""
    n_rows, lanes = x2d.shape
    itemsize = jnp.dtype(x2d.dtype).itemsize
    if row_tile is None:
        row_tile = _choose_row_tile(n_rows, lanes, itemsize)
    row_tile = min(int(row_tile), n_rows)
    if row_tile < n_rows and row_tile % 8 != 0:
        row_tile = ((row_tile + 7) // 8) * 8      # sublane constraint when tiling
    num_blocks = (n_rows + row_tile - 1) // row_tile   # ragged last block is OK

    block_bytes = row_tile * lanes * itemsize
    # Explicit scoped-VMEM budget derived from the actual buffers
    # ((in + out) x double buffer, with headroom); safe on v5e/v6e/v7x.
    vmem_limit = int(min(max(6 * block_bytes, 16 * 2**20), 48 * 2**20))

    kernel = functools.partial(_squash_kernel, n_feat=n_feat, hw=hw)
    return pl.pallas_call(
        kernel,
        out_shape=jax.ShapeDtypeStruct((n_rows, lanes), x2d.dtype),
        grid=(num_blocks,),
        in_specs=[pl.BlockSpec((row_tile, lanes), lambda i: (i, 0))],
        out_specs=pl.BlockSpec((row_tile, lanes), lambda i: (i, 0)),
        compiler_params=pltpu.CompilerParams(
            dimension_semantics=("parallel",),
            vmem_limit_bytes=vmem_limit,
        ),
        # NOTE: no input_output_aliases: the kernel input is (a reshape view of)
        # the caller's un-donated argument, so declaring an alias would force XLA
        # to insert a defensive copy rather than save one.
    )(x2d)


@functools.partial(jax.jit,
                   static_argnames=("n_unique", "n_share", "n_feat", "row_tile"))
def conv_to_cap_forward(x, n_unique, n_share, n_feat, row_tile=None):
    """Pallas implementation of ConvToCapLayer.forward.

    x: (..., C, H, W) conv output (NCHW), float32 or bfloat16.
    returns: (B, n_unique, n_share, n_feat, 1), same dtype as x.
    """
    c, h, w = x.shape[-3], x.shape[-2], x.shape[-1]
    if c % n_feat != 0:
        raise ValueError("C must be a multiple of n_in_features")
    x4 = x.reshape(-1, c, h, w)
    b = x4.shape[0]
    hw = h * w

    # Squash groups are n_feat-long runs of consecutive channels, so operate
    # directly on the NCHW-derived 2D view (reshape only, no copy).
    x2d = x4.reshape(b * (c // n_feat), n_feat * hw)
    y2d = _squash_pallas(x2d, n_feat, hw, row_tile)

    # Single, inherently required layout change to the PyTorch output order
    # (b, w, h, c); when used inside a network XLA can fuse it into the consumer.
    y = y2d.reshape(b, c // n_feat, n_feat, h, w)
    y = jnp.transpose(y, (0, 4, 3, 1, 2))         # (B, W, H, C//n_feat, n_feat)
    return y.reshape(-1, n_unique, n_share, n_feat, 1)


# ------------------------- pure-JAX reference -------------------------------

def _squash_ref(x, axis):
    norm = jnp.linalg.norm(x, axis=axis, keepdims=True)
    return x * norm / (1.0 + norm ** 2)


def _conv_to_cap_ref(x, n_unique, n_share, n_feat):
    c, h, w = x.shape[-3], x.shape[-2], x.shape[-1]
    xr = x.astype(jnp.float32).reshape(-1, c, h, w)
    xr = jnp.transpose(xr, (0, 3, 2, 1))          # torch.transpose(x, 1, 3)
    xr = xr.reshape(-1, n_unique, n_share, n_feat, 1)
    return _squash_ref(xr, axis=-2)


def _check(x, n_unique, n_share, n_feat, row_tile=None, atol=2e-3, rtol=2e-3):
    out = conv_to_cap_forward(x, n_unique, n_share, n_feat, row_tile=row_tile)
    out = jax.block_until_ready(out)
    ref = _conv_to_cap_ref(x, n_unique, n_share, n_feat)
    assert out.shape == ref.shape, (out.shape, ref.shape)
    assert out.dtype == x.dtype, out.dtype
    outf = out.astype(jnp.float32)
    # Tolerance accounts for the EUP approximate reciprocal (and bf16 output
    # rounding in the bf16 case); math is otherwise exact f32.
    assert jnp.allclose(outf, ref, atol=atol, rtol=rtol), float(
        jnp.max(jnp.abs(outf - ref)))


if __name__ == "__main__":
    key = jax.random.PRNGKey(0)
    k1, k2, k3, k4 = jax.random.split(key, 4)

    # 1) Primary shape: (B, C, H, W) with H*W = n_unique, C = n_share * n_feat.
    B, C, H, W = 2, 32, 4, 4
    x1 = jax.random.normal(k1, (B, C, H, W), dtype=jnp.float32)
    _check(x1, n_unique=H * W, n_share=4, n_feat=8)

    # 2) Multi-block grid with a ragged last row block (rows = 15, row_tile = 8).
    B, C, H, W = 3, 40, 8, 4
    x2 = jax.random.normal(k2, (B, C, H, W), dtype=jnp.float32)
    _check(x2, n_unique=H * W, n_share=5, n_feat=8, row_tile=8)

    # 3) Non-power-of-two n_feat (exercises the linear roll path).
    B, C, H, W = 2, 15, 8, 16
    x3 = jax.random.normal(k3, (B, C, H, W), dtype=jnp.float32)
    _check(x3, n_unique=H * W, n_share=3, n_feat=5)

    # 4) bf16 end-to-end (norm/scale still computed in f32 inside the kernel).
    B, C, H, W = 4, 32, 4, 4
    x4 = jax.random.normal(k4, (B, C, H, W), dtype=jnp.bfloat16)
    _check(x4, n_unique=H * W, n_share=4, n_feat=8, atol=5e-3, rtol=2e-2)

    print("KERNEL_OK")
</pallas_src>

<mosaic_0001>
module attributes {stable_mosaic.version = 11 : i64} {
  func.func @_squash_kernel(%arg0: i32, %arg1: memref<8x128xf32, #tpu.memory_space<vmem>>, %arg2: memref<8x128xf32, #tpu.memory_space<vmem>>) attributes {dimension_semantics = [#tpu.dimension_semantics<parallel>], iteration_bounds = array<i64: 1>, scalar_prefetch = 0 : i64, scratch_operands = 0 : i64, tpu.core_type = #tpu.core_type<tc>, window_params = [{transform_indices = @transform_0, window_bounds = array<i64: 8, 128>}, {transform_indices = @transform_1, window_bounds = array<i64: 8, 128>}]} {
    %c0 = arith.constant 0 : index
    %c0_0 = arith.constant 0 : index
    %0 = vector.load %arg1[%c0, %c0_0] : memref<8x128xf32, #tpu.memory_space<vmem>>, vector<8x128xf32>
    %1 = arith.mulf %0, %0 : vector<8x128xf32>
    %c16_i32 = arith.constant 16 : i32
    %2 = tpu.dynamic_rotate %1 by %c16_i32 dim 1 : vector<8x128xf32>, i32 -> vector<8x128xf32>
    %3 = arith.addf %1, %2 : vector<8x128xf32>
    %c32_i32 = arith.constant 32 : i32
    %4 = tpu.dynamic_rotate %3 by %c32_i32 dim 1 : vector<8x128xf32>, i32 -> vector<8x128xf32>
    %5 = arith.addf %3, %4 : vector<8x128xf32>
    %c64_i32 = arith.constant 64 : i32
    %6 = tpu.dynamic_rotate %5 by %c64_i32 dim 1 : vector<8x128xf32>, i32 -> vector<8x128xf32>
    %7 = arith.addf %5, %6 : vector<8x128xf32>
    %8 = math.sqrt %7 : vector<8x128xf32>
    %cst = arith.constant 1.000000e+00 : f32
    %9 = vector.broadcast %cst : f32 to vector<8x128xf32>
    %10 = arith.addf %9, %7 : vector<8x128xf32>
    %11 = tpu.reciprocal %10 {approx = true} : vector<8x128xf32> -> vector<8x128xf32>
    %12 = arith.mulf %8, %11 : vector<8x128xf32>
    %13 = arith.mulf %0, %12 : vector<8x128xf32>
    %c0_1 = arith.constant 0 : index
    %c0_2 = arith.constant 0 : index
    %14 = vector.load %arg2[%c0_1, %c0_2] : memref<8x128xf32, #tpu.memory_space<vmem>>, vector<8x128xf32>
    tpu.vector_store %arg2[%c0_1, %c0_2], %13 {strides = array<i32>} : memref<8x128xf32, #tpu.memory_space<vmem>>, vector<8x128xf32>,
    return
  }
  func.func @transform_0(%arg0: i32) -> (i32, i32) {
    %c0_i32 = arith.constant 0 : i32
    %c0_i32_0 = arith.constant 0 : i32
    return %arg0, %c0_i32 : i32, i32
  }
  func.func @transform_1(%arg0: i32) -> (i32, i32) {
    %c0_i32 = arith.constant 0 : i32
    %c0_i32_0 = arith.constant 0 : i32
    return %arg0, %c0_i32 : i32, i32
  }
}

</mosaic_0001>

<llo_original>
// kernel: conv_to_cap_forward.1
$region0: #{conv_to_cap_forward.1}
  #allocation0 [shape = 'u32[]', space=smem, size = 0x4, offset = 0x4, fixed_abs, tag = 'smem constant byte address 0x4 - core index']
  #allocation1 [shape = 'u32[144,128]{1,0:T(1,128)}', space=vmem, size = 0x12000, scoped, tag = 'internal scratch']
  %s0 = inlined_call_operand.vmem [shape: f32[8,128], index: 0, kind: input, shape index: {}]
  %s1 = inlined_call_operand.vmem [shape: f32[8,128], index: 1, kind: output, shape index: {}]
  %s2 = sld [smem:[#allocation0]]
  $region14: #{conv_to_cap_forward.1} parent=0
    _
  %s4 = ssub.s32 1, %s2
  %s5 = scalar_select 0, %s4, %s2
  // Predicated region
  $region2: #{conv_to_cap_forward.1} parent=0 // pred_check
    _
  $region3: #{conv_to_cap_forward.1} parent=0 // pred_check_branch
    %7 = sbr.rel (0) target = $region5
  $region4: #{conv_to_cap_forward.1} parent=0 // pred_region
    _
  $region5: #{conv_to_cap_forward.1} parent=0 // pred_fallthru
    _
  %v8 = vld [vmem:[%s0] sm:$0xff]
  %v9 = vmul.f32 %v8, %v8
  %10 = vrot.lane.b32.xlu0 %v9, 16
  %v11 = vpop.permute.xlu0 %10
  %v12 = vadd.f32 %v9, %v11
  %13 = vrot.lane.b32.xlu0 %v12, 32
  %v14 = vpop.permute.xlu0 %13
  %v15 = vadd.f32 %v12, %v14
  %16 = vrot.lane.b32.xlu0 %v15, 64
  %v17 = vpop.permute.xlu0 %16
  %v18 = vadd.f32 %v15, %v17
  %v19 = vrsqrt.pop %v18
  %v20 = vmul.f32 %v18, %v19
  %vm21 = vcmp.eq.f32.partialorder %v18, inf
  %v22 = vsel %vm21, %v18, %v20
  %vm23 = vcmp.eq.f32.partialorder %v18, 0.0
  %v24 = vand.u32 %v18, 2147483648
  %v25 = vsel %vm23, %v24, %v22
  %v26 = vadd.f32 %v18, 1.0
  %v27 = vrcp.pop %v26
  %v28 = vmul.f32 %v25, %v27
  %v29 = vmul.f32 %v8, %v28
  %30 = vst [vmem:[%s1] sm:$0xff] %v29
  // Predicated region
  $region6: #{conv_to_cap_forward.1} parent=0 // pred_check
    _
  $region7: #{conv_to_cap_forward.1} parent=0 // pred_check_branch
    %32 = sbr.rel (0) target = $region9
  $region8: #{conv_to_cap_forward.1} parent=0 // pred_region
    _
  $region9: #{conv_to_cap_forward.1} parent=0 // pred_fallthru
    _
  // Predicated region
  $region10: #{conv_to_cap_forward.1} parent=0 // pred_check
    _
  $region11: #{conv_to_cap_forward.1} parent=0 // pred_check_branch
    %34 = sbr.rel (0) target = $region13
  $region12: #{conv_to_cap_forward.1} parent=0 // pred_region
    _
  $region13: #{conv_to_cap_forward.1} parent=0 // pred_fallthru
    _

</llo_original>
